<compile_context>
chip_gen: v7x
topology: tpu7x:2x2x1
jax: 0.10.0
libtpu: 0.0.40
codegen_flags: <defaults>
</compile_context>

<pallas_src>
import jax
import jax.numpy as jnp
from jax.experimental import pallas as pl
from jax.experimental.pallas import tpu as pltpu

# Small synthetic problem sizes consistent with the module:
N_NODES = 32      # num graph nodes
N_EDGES = 64      # num edges
F_IN = 8          # data.num_features
HIDDEN = 16       # GCNConv hidden width (from module)
N_CLASSES = 4     # data.num_classes
PAD_C = 128       # lane-dense padded width for hidden / class dims
NEG_PAD = -1e30   # bias for padded logit lanes -> exp() underflows to 0

# Parameter slab layout ([F_IN + 2*PAD_C + 3, 128] f32, zero-padded):
#   rows [0            : F_IN)           conv1 W [F_IN, HIDDEN]  in lanes 0:16
#   rows [F_IN         : F_IN+PAD_C)     conv2 W [128, 128]      rows>=16 zero
#   rows [F_IN+PAD_C   : F_IN+2*PAD_C)   lin2  W [128, 128]      rows>=16 zero,
#                                                                lanes>=C zero
#   row  F_IN+2*PAD_C      conv1 bias (lanes 0:16)
#   row  F_IN+2*PAD_C + 1  conv2 bias (lanes 0:16)
#   row  F_IN+2*PAD_C + 2  lin2  bias (lanes >= C set to NEG_PAD)
W2_ROW = F_IN
W3_ROW = F_IN + PAD_C
B_ROW = F_IN + 2 * PAD_C
SLAB_ROWS = B_ROW + 3

# Edge slab layout ([3, E] int32): row 0 = src, row 1 = dst,
#   row 2 = edge_weight bit-pattern (f32 bitcast to i32).


def net_kernel(edge_ref, x_ref, w_ref, out_ref):
    n_edges = edge_ref.shape[1]
    n_nodes = x_ref.shape[0]

    # --- build weighted adjacency A[dst, src] += w on the MXU ----------------
    src = edge_ref[0:1, :]                                # [1, E] int32
    dst = edge_ref[1:2, :]                                # [1, E] int32
    w_e = pltpu.bitcast(edge_ref[2:3, :], jnp.float32)    # [1, E] f32

    row = jax.lax.broadcasted_iota(jnp.int32, (n_nodes, n_edges), 0)
    s_mt = (row == src).astype(jnp.float32)               # [N, E] s_mt[j,e]=[src_e==j]
    d_mt = (row == dst).astype(jnp.float32) * w_e         # [N, E] weighted dst one-hot

    # A[i, j] = sum_e w_e * [dst_e==i] * [src_e==j]  (RHS-transposed contraction)
    a = jax.lax.dot_general(d_mt, s_mt, (((1,), (1,)), ((), ())),
                            preferred_element_type=jnp.float32)   # [N, N]

    x = x_ref[...]                                        # [N, F_IN]

    # --- conv1: GCNConv(F_IN, HIDDEN) + relu (dropout = identity) ------------
    h = jnp.dot(x, w_ref[0:F_IN, :], preferred_element_type=jnp.float32)  # [N,128]
    h = jnp.dot(a, h, preferred_element_type=jnp.float32) + w_ref[B_ROW:B_ROW + 1, :]
    h = jnp.maximum(h, 0.0)                               # cols >= HIDDEN stay 0

    # --- conv2: GCNConv(HIDDEN, HIDDEN) + relu (full-lane [128,128] weight) ---
    h = jnp.dot(h, w_ref[W2_ROW:W2_ROW + PAD_C, :], preferred_element_type=jnp.float32)
    h = jnp.dot(a, h, preferred_element_type=jnp.float32) + w_ref[B_ROW + 1:B_ROW + 2, :]
    h = jnp.maximum(h, 0.0)

    # --- lin2 into lane-dense [N, 128] logits; padded lanes get NEG_PAD bias --
    logits = (jnp.dot(h, w_ref[W3_ROW:W3_ROW + PAD_C, :],
                      preferred_element_type=jnp.float32)
              + w_ref[B_ROW + 2:B_ROW + 3, :])

    # --- softmax over classes; padded lanes contribute exactly 0 -------------
    m = jnp.max(logits, axis=1, keepdims=True)
    ex = jnp.exp(logits - m)
    denom = jnp.sum(ex, axis=1, keepdims=True)
    out_ref[...] = ex / denom


def pack_params(params):
    """Pack (w1,b1,w2,b2,w3,b3) into ONE zero-padded parameter slab (1 DMA)."""
    w1, b1, w2, b2, w3, b3 = params
    slab = jnp.zeros((SLAB_ROWS, PAD_C), jnp.float32)
    slab = slab.at[0:F_IN, 0:HIDDEN].set(w1)
    slab = slab.at[W2_ROW:W2_ROW + HIDDEN, 0:HIDDEN].set(w2)
    slab = slab.at[W3_ROW:W3_ROW + HIDDEN, 0:N_CLASSES].set(w3)
    slab = slab.at[B_ROW, 0:HIDDEN].set(b1)
    slab = slab.at[B_ROW + 1, 0:HIDDEN].set(b2)
    slab = slab.at[B_ROW + 2, :].set(jnp.full((PAD_C,), NEG_PAD, jnp.float32))
    slab = slab.at[B_ROW + 2, 0:N_CLASSES].set(b3)
    return slab


@jax.jit
def net_forward(x, edge_index, edge_weight, w_slab):
    """x: [N, F_in] f32, edge_index: [2, E] i32 (row0=src, row1=dst),
    edge_weight: [E] f32, w_slab from pack_params()."""
    n = x.shape[0]
    # Merge edge indices + bit-packed weights into one int32 [3, E] slab.
    ew_bits = jax.lax.bitcast_convert_type(edge_weight.astype(jnp.float32), jnp.int32)
    edge_slab = jnp.concatenate(
        [edge_index.astype(jnp.int32), ew_bits[None, :]], axis=0)       # [3, E]

    vmem = pl.BlockSpec(memory_space=pltpu.MemorySpace.VMEM)
    out_pad = pl.pallas_call(
        net_kernel,
        out_shape=jax.ShapeDtypeStruct((n, PAD_C), jnp.float32),
        in_specs=[vmem, vmem, vmem],
        out_specs=vmem,
    )(edge_slab, x, w_slab)
    return out_pad[:, :N_CLASSES]


def net_reference(x, edge_index, edge_weight, params):
    """Pure-JAX reference of the module forward (for validation)."""
    w1, b1, w2, b2, w3, b3 = params
    n = x.shape[0]
    a = jnp.zeros((n, n), jnp.float32).at[edge_index[1], edge_index[0]].add(edge_weight)
    h = jnp.maximum(a @ (x @ w1) + b1, 0.0)
    h = jnp.maximum(a @ (h @ w2) + b2, 0.0)
    return jax.nn.softmax(h @ w3 + b3, axis=1)


def init_params(key):
    """Deterministic parameter init (shapes from the module __init__)."""
    ks = jax.random.split(key, 6)

    def uniform(k, shape, fan_in):
        bound = 1.0 / jnp.sqrt(jnp.float32(fan_in))
        return jax.random.uniform(k, shape, jnp.float32, -bound, bound)

    w1 = uniform(ks[0], (F_IN, HIDDEN), F_IN)         # conv1 weight [in, out]
    b1 = uniform(ks[1], (HIDDEN,), F_IN)              # conv1 bias
    w2 = uniform(ks[2], (HIDDEN, HIDDEN), HIDDEN)     # conv2 weight
    b2 = uniform(ks[3], (HIDDEN,), HIDDEN)            # conv2 bias
    w3 = uniform(ks[4], (HIDDEN, N_CLASSES), HIDDEN)  # lin2 weight [in, out]
    b3 = uniform(ks[5], (N_CLASSES,), HIDDEN)         # lin2 bias
    return (w1, b1, w2, b2, w3, b3)


if __name__ == "__main__":
    key = jax.random.PRNGKey(0)
    k_x, k_ei, k_ew, k_p = jax.random.split(key, 4)

    x = jax.random.normal(k_x, (N_NODES, F_IN), jnp.float32)
    edge_index = jax.random.randint(k_ei, (2, N_EDGES), 0, N_NODES, jnp.int32)
    edge_weight = jax.random.uniform(k_ew, (N_EDGES,), jnp.float32)
    params = init_params(k_p)
    w_slab = pack_params(params)           # packed ONCE, outside the call path

    out = net_forward(x, edge_index, edge_weight, w_slab)
    out = jax.block_until_ready(out)

    assert out.shape == (N_NODES, N_CLASSES)
    # softmax rows sum to 1 (exact division in the kernel)
    assert bool(jnp.allclose(jnp.sum(out, axis=1), 1.0, atol=1e-4))
    # match the pure-JAX reference of the module forward
    ref = net_reference(x, edge_index, edge_weight, params)
    assert bool(jnp.allclose(out, ref, atol=5e-3, rtol=5e-3)), \
        float(jnp.max(jnp.abs(out - ref)))
    print("KERNEL_OK")
</pallas_src>

<mosaic_0001>
module attributes {stable_mosaic.version = 11 : i64} {
  func.func @net_kernel(%arg0: memref<3x64xi32, #tpu.memory_space<vmem>>, %arg1: memref<32x8xf32, #tpu.memory_space<vmem>>, %arg2: memref<267x128xf32, #tpu.memory_space<vmem>>, %arg3: memref<32x128xf32, #tpu.memory_space<vmem>>) attributes {dimension_semantics = [], scalar_prefetch = 0 : i64, scratch_operands = 0 : i64, tpu.core_type = #tpu.core_type<tc>} {
    %c0 = arith.constant 0 : index
    %c0_0 = arith.constant 0 : index
    %0 = vector.load %arg0[%c0, %c0_0] : memref<3x64xi32, #tpu.memory_space<vmem>>, vector<1x64xi32>
    %c1 = arith.constant 1 : index
    %c0_1 = arith.constant 0 : index
    %1 = vector.load %arg0[%c1, %c0_1] : memref<3x64xi32, #tpu.memory_space<vmem>>, vector<1x64xi32>
    %c2 = arith.constant 2 : index
    %c0_2 = arith.constant 0 : index
    %2 = vector.load %arg0[%c2, %c0_2] : memref<3x64xi32, #tpu.memory_space<vmem>>, vector<1x64xi32>
    %3 = tpu.bitcast %2 : vector<1x64xi32> -> vector<1x64xf32>
    %4 = tpu.iota {dimensions = array<i32: 0>} : vector<32x64xi32>
    %5 = vector.broadcast %0 : vector<1x64xi32> to vector<32x64xi32>
    %6 = arith.cmpi eq, %4, %5 : vector<32x64xi32>
    %7 = arith.extui %6 : vector<32x64xi1> to vector<32x64xi32>
    %8 = arith.sitofp %7 : vector<32x64xi32> to vector<32x64xf32>
    %9 = vector.broadcast %1 : vector<1x64xi32> to vector<32x64xi32>
    %10 = arith.cmpi eq, %4, %9 : vector<32x64xi32>
    %11 = arith.extui %10 : vector<32x64xi1> to vector<32x64xi32>
    %12 = arith.sitofp %11 : vector<32x64xi32> to vector<32x64xf32>
    %13 = vector.broadcast %3 : vector<1x64xf32> to vector<32x64xf32>
    %14 = arith.mulf %12, %13 : vector<32x64xf32>
    %cst = arith.constant dense<0.000000e+00> : vector<32x32xf32>
    %15 = tpu.matmul %14, %8, %cst {dimension_numbers = #tpu.dot_dimension_numbers<[1], [1], [0], [0], [0, 0, 1, 0], [], []>} : vector<32x64xf32>, vector<32x64xf32>, vector<32x32xf32> -> vector<32x32xf32>
    %c0_3 = arith.constant 0 : index
    %c0_4 = arith.constant 0 : index
    %16 = vector.load %arg1[%c0_3, %c0_4] : memref<32x8xf32, #tpu.memory_space<vmem>>, vector<32x8xf32>
    %c0_5 = arith.constant 0 : index
    %c0_6 = arith.constant 0 : index
    %17 = vector.load %arg2[%c0_5, %c0_6] : memref<267x128xf32, #tpu.memory_space<vmem>>, vector<8x128xf32>
    %cst_7 = arith.constant dense<0.000000e+00> : vector<32x128xf32>
    %18 = tpu.matmul %16, %17, %cst_7 {dimension_numbers = #tpu.dot_dimension_numbers<[1], [0], [0], [1], [0, 0, 1, 1], [], []>} : vector<32x8xf32>, vector<8x128xf32>, vector<32x128xf32> -> vector<32x128xf32>
    %cst_8 = arith.constant dense<0.000000e+00> : vector<32x128xf32>
    %19 = tpu.matmul %15, %18, %cst_8 {dimension_numbers = #tpu.dot_dimension_numbers<[1], [0], [0], [1], [0, 0, 1, 1], [], []>} : vector<32x32xf32>, vector<32x128xf32>, vector<32x128xf32> -> vector<32x128xf32>
    %c264 = arith.constant 264 : index
    %c0_9 = arith.constant 0 : index
    %20 = vector.load %arg2[%c264, %c0_9] : memref<267x128xf32, #tpu.memory_space<vmem>>, vector<1x128xf32>
    %21 = vector.broadcast %20 : vector<1x128xf32> to vector<32x128xf32>
    %22 = arith.addf %19, %21 : vector<32x128xf32>
    %cst_10 = arith.constant 0.000000e+00 : f32
    %23 = vector.broadcast %cst_10 : f32 to vector<32x128xf32>
    %24 = arith.maximumf %22, %23 : vector<32x128xf32>
    %c8 = arith.constant 8 : index
    %c0_11 = arith.constant 0 : index
    %25 = vector.load %arg2[%c8, %c0_11] : memref<267x128xf32, #tpu.memory_space<vmem>>, vector<128x128xf32>
    %cst_12 = arith.constant dense<0.000000e+00> : vector<32x128xf32>
    %26 = tpu.matmul %24, %25, %cst_12 {dimension_numbers = #tpu.dot_dimension_numbers<[1], [0], [0], [1], [0, 0, 1, 1], [], []>} : vector<32x128xf32>, vector<128x128xf32>, vector<32x128xf32> -> vector<32x128xf32>
    %cst_13 = arith.constant dense<0.000000e+00> : vector<32x128xf32>
    %27 = tpu.matmul %15, %26, %cst_13 {dimension_numbers = #tpu.dot_dimension_numbers<[1], [0], [0], [1], [0, 0, 1, 1], [], []>} : vector<32x32xf32>, vector<32x128xf32>, vector<32x128xf32> -> vector<32x128xf32>
    %c265 = arith.constant 265 : index
    %c0_14 = arith.constant 0 : index
    %28 = vector.load %arg2[%c265, %c0_14] : memref<267x128xf32, #tpu.memory_space<vmem>>, vector<1x128xf32>
    %29 = vector.broadcast %28 : vector<1x128xf32> to vector<32x128xf32>
    %30 = arith.addf %27, %29 : vector<32x128xf32>
    %cst_15 = arith.constant 0.000000e+00 : f32
    %31 = vector.broadcast %cst_15 : f32 to vector<32x128xf32>
    %32 = arith.maximumf %30, %31 : vector<32x128xf32>
    %c136 = arith.constant 136 : index
    %c0_16 = arith.constant 0 : index
    %33 = vector.load %arg2[%c136, %c0_16] : memref<267x128xf32, #tpu.memory_space<vmem>>, vector<128x128xf32>
    %cst_17 = arith.constant dense<0.000000e+00> : vector<32x128xf32>
    %34 = tpu.matmul %32, %33, %cst_17 {dimension_numbers = #tpu.dot_dimension_numbers<[1], [0], [0], [1], [0, 0, 1, 1], [], []>} : vector<32x128xf32>, vector<128x128xf32>, vector<32x128xf32> -> vector<32x128xf32>
    %c266 = arith.constant 266 : index
    %c0_18 = arith.constant 0 : index
    %35 = vector.load %arg2[%c266, %c0_18] : memref<267x128xf32, #tpu.memory_space<vmem>>, vector<1x128xf32>
    %36 = vector.broadcast %35 : vector<1x128xf32> to vector<32x128xf32>
    %37 = arith.addf %34, %36 : vector<32x128xf32>
    %cst_19 = arith.constant dense<0xFF800000> : vector<32xf32>
    %38 = vector.multi_reduction <maximumf>, %37, %cst_19 [1] : vector<32x128xf32> to vector<32xf32>
    %39 = vector.shape_cast %38 : vector<32xf32> to vector<32x1xf32>
    %40 = vector.broadcast %39 : vector<32x1xf32> to vector<32x128xf32>
    %41 = arith.subf %37, %40 : vector<32x128xf32>
    %42 = math.exp %41 : vector<32x128xf32>
    %cst_20 = arith.constant dense<0.000000e+00> : vector<32xf32>
    %43 = vector.multi_reduction <add>, %42, %cst_20 [1] : vector<32x128xf32> to vector<32xf32>
    %44 = vector.shape_cast %43 : vector<32xf32> to vector<32x1xf32>
    %45 = vector.broadcast %44 : vector<32x1xf32> to vector<32x128xf32>
    %46 = arith.divf %42, %45 : vector<32x128xf32>
    %c0_21 = arith.constant 0 : index
    %c0_22 = arith.constant 0 : index
    %47 = vector.load %arg3[%c0_21, %c0_22] : memref<32x128xf32, #tpu.memory_space<vmem>>, vector<32x128xf32>
    tpu.vector_store %arg3[%c0_21, %c0_22], %46 {strides = array<i32>} : memref<32x128xf32, #tpu.memory_space<vmem>>, vector<32x128xf32>,
    return
  }
}

</mosaic_0001>

<llo_original>
// kernel: net_forward.1
$region0: #{net_forward.1}
  #allocation0 [shape = 'u32[]', space=smem, size = 0x4, offset = 0x4, fixed_abs, tag = 'smem constant byte address 0x4 - core index']
  #allocation1 [shape = 'u32[144,128]{1,0:T(1,128)}', space=vmem, size = 0x12000, scoped, tag = 'internal scratch']
  %s0 = inlined_call_operand.vmem [shape: s32[3,64], index: 0, kind: input, shape index: {}]
  %s1 = inlined_call_operand.vmem [shape: f32[32,8], index: 1, kind: input, shape index: {}]
  %s2 = inlined_call_operand.hbm [shape: f32[267,128], index: 2, kind: input, shape index: {}]
  %s3 = inlined_call_operand.vmem [shape: f32[32,128], index: 3, kind: output, shape index: {}]
  %s4 = sld [smem:[#allocation0]]
  $region26: #{net_forward.1} parent=0
    _
  %s6 = ssub.s32 1, %s4
  %s7 = scalar_select 0, %s6, %s4
  $region1: #{net_forward.1} parent=0
    #allocation2 [shape = 'u8[139264]{0}', space=vmem, size = 0x22000, scoped, tag = 'input window, operand 2, single buffered']
    #allocation3 [shape = 's32[1]{0}', space=sflag, size = 0x4, scoped, tag = 'scoped memory for net_forward.1']
    %8 = vsyncpa [#allocation3], 0
    // Predicated region
    $region2: #{net_forward.1} parent=1 // pred_check
      _
    $region3: #{net_forward.1} parent=1 // pred_check_branch
      %10 = sbr.rel (0) target = $region5
    $region4: #{net_forward.1} parent=1 // pred_region
      _
    $region5: #{net_forward.1} parent=1 // pred_fallthru
      _
    // Predicated region
    $region6: #{net_forward.1} parent=1 // pred_check
      _
    $region7: #{net_forward.1} parent=1 // pred_check_branch
      %12 = sbr.rel (0) target = $region9
    $region8: #{net_forward.1} parent=1 // pred_region
      _
    $region9: #{net_forward.1} parent=1 // pred_fallthru
      _
    // Predicated region
    $region10: #{net_forward.1} parent=1 // pred_check
      _
    $region11: #{net_forward.1} parent=1 // pred_check_branch
      %14 = sbr.rel (0) target = $region13
    $region12: #{net_forward.1} parent=1 // pred_region
      %s16 = ssub.s32 4352, 4352
      %17 = vsyncadd [#allocation3], %s16
      %s18 = sshll.u32 [#allocation2], 4
      %s19 = int_to_ptr.vmem [resolvable:$true] %s18
      %24 = dma.hbm_to_vmem [thread:$0]  %s2, 4352, %s19, [#allocation3], 128, 128, 8
    $region13: #{net_forward.1} parent=1 // pred_fallthru
      _
    // Predicated region
    $region14: #{net_forward.1} parent=1 // pred_check
      _
    $region15: #{net_forward.1} parent=1 // pred_check_branch
      %26 = sbr.rel (0) target = $region17
    $region16: #{net_forward.1} parent=1 // pred_region
      %27 = dma.done [#allocation3], 4352
    $region17: #{net_forward.1} parent=1 // pred_fallthru
      _
    %v28 = vld [vmem:[%s0] sm:$0x1]
    %v29 = vld [vmem:[%s0 + $0x1] sm:$0x1]
    %v30 = vld [vmem:[%s0 + $0x2] sm:$0x1]
    %v32 = vlaneseq
    %v33 = vshrl.u32 %v32, 7
    %v34 = vadd.s32 %v33, 8
    %v35 = vadd.s32 %v33, 16
    %v36 = vadd.s32 %v33, 24
    %v37 = vlaneseq
    %v38 = vshrl.u32 %v37, 7
    %v39 = vsub.s32 0, %v38
    %v40 = vrot.slane %v28, %v39
    %vm41 = vcmp.eq.s32.totalorder %v33, %v40
    %vm42 = vcmp.eq.s32.totalorder %v34, %v40
    %vm43 = vcmp.eq.s32.totalorder %v35, %v40
    %vm44 = vcmp.eq.s32.totalorder %v36, %v40
    %v45 = vsel %vm41, 1, 0
    %v46 = vsel %vm42, 1, 0
    %v47 = vsel %vm43, 1, 0
    %v48 = vsel %vm44, 1, 0
    %v49 = vcvt.s32.f32 %v45
    %v50 = vcvt.s32.f32 %v46
    %v51 = vcvt.s32.f32 %v47
    %v52 = vcvt.s32.f32 %v48
    %v53 = vlaneseq
    %v54 = vshrl.u32 %v53, 7
    %v55 = vsub.s32 0, %v54
    %v56 = vrot.slane %v29, %v55
    %vm57 = vcmp.eq.s32.totalorder %v33, %v56
    %vm58 = vcmp.eq.s32.totalorder %v34, %v56
    %vm59 = vcmp.eq.s32.totalorder %v35, %v56
    %vm60 = vcmp.eq.s32.totalorder %v36, %v56
    %v61 = vsel %vm57, 1, 0
    %v62 = vsel %vm58, 1, 0
    %v63 = vsel %vm59, 1, 0
    %v64 = vsel %vm60, 1, 0
    %v65 = vcvt.s32.f32 %v61
    %v66 = vcvt.s32.f32 %v62
    %v67 = vcvt.s32.f32 %v63
    %v68 = vcvt.s32.f32 %v64
    %v69 = vlaneseq
    %v70 = vshrl.u32 %v69, 7
    %v71 = vsub.s32 0, %v70
    %v72 = vrot.slane %v30, %v71
    %v73 = vmul.f32 %v65, %v72
    %v74 = vmul.f32 %v66, %v72
    %v75 = vmul.f32 %v67, %v72
    %v76 = vmul.f32 %v68, %v72
    %vm77 = vcmask 523264
    %v79 = vsel %vm77, %v73, 0
    %v82 = vsel %vm77, %v74, 0
    %v85 = vsel %vm77, %v75, 0
    %v88 = vsel %vm77, %v76, 0
    %v91 = vsel %vm77, %v49, 0
    %v94 = vsel %vm77, %v50, 0
    %v97 = vsel %vm77, %v51, 0
    %v100 = vsel %vm77, %v52, 0
    %102 = vmatprep.subr.mxu0 0.0
    %103 = vmatpush1.xpose.msra.mxu0 %v91
    %104 = vmatprep.subr.mxu0 0.0
    %105 = vmatpush1.xpose.msra.mxu0 %v94
    %106 = vmatprep.subr.mxu0 0.0
    %107 = vmatpush1.xpose.msra.mxu0 %v97
    %108 = vmatprep.subr.mxu0 0.0
    %109 = vmatpush1.xpose.msra.mxu0 %v100
    %110 = vmatprep.subr.mxu0 0.0
    %111 = vmatpush1.xpose.msra.mxu0 0.0
    %112 = vmatprep.subr.mxu0 0.0
    %113 = vmatpush1.xpose.msra.mxu0 0.0
    %114 = vmatprep.subr.mxu0 0.0
    %115 = vmatpush1.xpose.msra.mxu0 0.0
    %116 = vmatprep.subr.mxu0 0.0
    %117 = vmatpush1.xpose.msra.mxu0 0.0
    %118 = vmatprep.subr.mxu0 0.0
    %119 = vmatpush1.xpose.msra.mxu0 0.0
    %120 = vmatprep.subr.mxu0 0.0
    %121 = vmatpush1.xpose.msra.mxu0 0.0
    %122 = vmatprep.subr.mxu0 0.0
    %123 = vmatpush1.xpose.msra.mxu0 0.0
    %124 = vmatprep.subr.mxu0 0.0
    %125 = vmatpush1.xpose.msra.mxu0 0.0
    %126 = vmatprep.subr.mxu0 0.0
    %127 = vmatpush1.xpose.msra.mxu0 0.0
    %128 = vmatprep.subr.mxu0 0.0
    %129 = vmatpush1.xpose.msra.mxu0 0.0
    %130 = vmatprep.subr.mxu0 0.0
    %131 = vmatpush1.xpose.msra.mxu0 0.0
    %132 = vmatprep.subr.mxu0 0.0
    %133 = vmatpush1.xpose.msra.mxu0 0.0
    %134 = vmatprep.subr.mxu0 0.0
    %135 = vmatpush1.xpose.msra.mxu0 0.0
    %136 = vmatprep.subr.mxu0 0.0
    %137 = vmatpush1.xpose.msra.mxu0 0.0
    %138 = vmatprep.subr.mxu0 0.0
    %139 = vmatpush1.xpose.msra.mxu0 0.0
    %140 = vmatprep.subr.mxu0 0.0
    %141 = vmatpush1.xpose.msra.mxu0 0.0
    %142 = vmatprep.subr.mxu0 0.0
    %143 = vmatpush1.xpose.msra.mxu0 0.0
    %144 = vmatprep.subr.mxu0 0.0
    %145 = vmatpush1.xpose.msra.mxu0 0.0
    %146 = vmatprep.subr.mxu0 0.0
    %147 = vmatpush1.xpose.msra.mxu0 0.0
    %148 = vmatprep.subr.mxu0 0.0
    %149 = vmatpush1.xpose.msra.mxu0 0.0
    %150 = vmatprep.subr.mxu0 0.0
    %151 = vmatpush1.xpose.msra.mxu0 0.0
    %152 = vmatprep.subr.mxu0 0.0
    %153 = vmatpush1.xpose.msra.mxu0 0.0
    %154 = vmatprep.subr.mxu0 0.0
    %155 = vmatpush1.xpose.msra.mxu0 0.0
    %156 = vmatprep.subr.mxu0 0.0
    %157 = vmatpush1.xpose.msra.mxu0 0.0
    %158 = vmatprep.subr.mxu0 0.0
    %159 = vmatpush1.xpose.msra.mxu0 0.0
    %160 = vmatprep.subr.mxu0 0.0
    %161 = vmatpush1.xpose.msra.mxu0 0.0
    %162 = vmatprep.subr.mxu0 0.0
    %163 = vmatpush1.xpose.msra.mxu0 0.0
    %164 = vmatprep.subr.mxu0 0.0
    %165 = vmatpush1.xpose.msra.mxu0 0.0
    %166 = vmatprep.mubr.f32.mxu0 0.0
    %167 = vmatmul.mubr.f32.gmra.mrb[0].mxu0 %v79
    %v168 = vpop.f32.mrb[0].mxu0
    %v169 = vadd.f32 0.0, %v168
    %v170 = vpop.f32.mrb[0].mxu0
    %171 = vmatprep.mubr.f32.mxu0 0.0
    %172 = vmatmul.mubr.f32.gmra.mrb[0].mxu0 %v82
    %v173 = vpop.f32.mrb[0].mxu0
    %v174 = vadd.f32 0.0, %v173
    %v175 = vpop.f32.mrb[0].mxu0
    %176 = vmatprep.mubr.f32.mxu0 0.0
    %177 = vmatmul.mubr.f32.gmra.mrb[0].mxu0 %v85
    %v178 = vpop.f32.mrb[0].mxu0
    %v179 = vadd.f32 0.0, %v178
    %v180 = vpop.f32.mrb[0].mxu0
    %181 = vmatprep.mubr.f32.mxu0 0.0
    %182 = vmatmul.mubr.f32.gmra.mrb[0].mxu0 %v88
    %v183 = vpop.f32.mrb[0].mxu0
    %v184 = vadd.f32 0.0, %v183
    %v185 = vpop.f32.mrb[0].mxu0
    %186 = vdwg.mxu0
    %v187 = vld [vmem:[%s1] sm:$0xff]
    %v188 = vld [vmem:[%s1 + $0x8] sm:$0xff]
    %v189 = vld [vmem:[%s1 + $0x10] sm:$0xff]
    %v190 = vld [vmem:[%s1 + $0x18] sm:$0xff]
    %v191 = vld [vmem:[#allocation2] sm:$0xff]
    %vm192 = vcmask 64512
    %v194 = vsel %vm192, %v187, 0
    %v197 = vsel %vm192, %v188, 0
    %v200 = vsel %vm192, %v189, 0
    %v203 = vsel %vm192, %v190, 0
    %205 = vmatprep.subr.mxu0 0.0
    %206 = vmatpush1.msra.mxu0 %v191
    %207 = vmatprep.subr.mxu0 0.0
    %208 = vmatpush1.msra.mxu0 0.0
    %209 = vmatprep.subr.mxu0 0.0
    %210 = vmatpush1.msra.mxu0 0.0
    %211 = vmatprep.subr.mxu0 0.0
    %212 = vmatpush1.msra.mxu0 0.0
    %213 = vmatprep.subr.mxu0 0.0
    %214 = vmatpush1.msra.mxu0 0.0
    %215 = vmatprep.subr.mxu0 0.0
    %216 = vmatpush1.msra.mxu0 0.0
    %217 = vmatprep.subr.mxu0 0.0
    %218 = vmatpush1.msra.mxu0 0.0
    %219 = vmatprep.subr.mxu0 0.0
    %220 = vmatpush1.msra.mxu0 0.0
    %221 = vmatprep.subr.mxu0 0.0
    %222 = vmatpush1.msra.mxu0 0.0
    %223 = vmatprep.subr.mxu0 0.0
    %224 = vmatpush1.msra.mxu0 0.0
    %225 = vmatprep.subr.mxu0 0.0
    %226 = vmatpush1.msra.mxu0 0.0
    %227 = vmatprep.subr.mxu0 0.0
    %228 = vmatpush1.msra.mxu0 0.0
    %229 = vmatprep.subr.mxu0 0.0
    %230 = vmatpush1.msra.mxu0 0.0
    %231 = vmatprep.subr.mxu0 0.0
    %232 = vmatpush1.msra.mxu0 0.0
    %233 = vmatprep.subr.mxu0 0.0
    %234 = vmatpush1.msra.mxu0 0.0
    %235 = vmatprep.subr.mxu0 0.0
    %236 = vmatpush1.msra.mxu0 0.0
    %237 = vmatprep.subr.mxu0 0.0
    %238 = vmatpush1.msra.mxu0 0.0
    %239 = vmatprep.subr.mxu0 0.0
    %240 = vmatpush1.msra.mxu0 0.0
    %241 = vmatprep.subr.mxu0 0.0
    %242 = vmatpush1.msra.mxu0 0.0
    %243 = vmatprep.subr.mxu0 0.0
    %244 = vmatpush1.msra.mxu0 0.0
    %245 = vmatprep.subr.mxu0 0.0
    %246 = vmatpush1.msra.mxu0 0.0
    %247 = vmatprep.subr.mxu0 0.0
    %248 = vmatpush1.msra.mxu0 0.0
    %249 = vmatprep.subr.mxu0 0.0
    %250 = vmatpush1.msra.mxu0 0.0
    %251 = vmatprep.subr.mxu0 0.0
    %252 = vmatpush1.msra.mxu0 0.0
    %253 = vmatprep.subr.mxu0 0.0
    %254 = vmatpush1.msra.mxu0 0.0
    %255 = vmatprep.subr.mxu0 0.0
    %256 = vmatpush1.msra.mxu0 0.0
    %257 = vmatprep.subr.mxu0 0.0
    %258 = vmatpush1.msra.mxu0 0.0
    %259 = vmatprep.subr.mxu0 0.0
    %260 = vmatpush1.msra.mxu0 0.0
    %261 = vmatprep.subr.mxu0 0.0
    %262 = vmatpush1.msra.mxu0 0.0
    %263 = vmatprep.subr.mxu0 0.0
    %264 = vmatpush1.msra.mxu0 0.0
    %265 = vmatprep.subr.mxu0 0.0
    %266 = vmatpush1.msra.mxu0 0.0
    %267 = vmatprep.subr.mxu0 0.0
    %268 = vmatpush1.msra.mxu0 0.0
    %269 = vmatprep.mubr.f32.mxu0 0.0
    %270 = vmatmul.mubr.f32.gmra.mrb[0].mxu0 %v194
    %v271 = vpop.f32.mrb[0].mxu0
    %v272 = vadd.f32 0.0, %v271
    %v273 = vpop.f32.mrb[0].mxu0
    %274 = vmatprep.mubr.f32.mxu0 0.0
    %275 = vmatmul.mubr.f32.gmra.mrb[0].mxu0 %v197
    %v276 = vpop.f32.mrb[0].mxu0
    %v277 = vadd.f32 0.0, %v276
    %v278 = vpop.f32.mrb[0].mxu0
    %279 = vmatprep.mubr.f32.mxu0 0.0
    %280 = vmatmul.mubr.f32.gmra.mrb[0].mxu0 %v200
    %v281 = vpop.f32.mrb[0].mxu0
    %v282 = vadd.f32 0.0, %v281
    %v283 = vpop.f32.mrb[0].mxu0
    %284 = vmatprep.mubr.f32.mxu0 0.0
    %285 = vmatmul.mubr.f32.gmra.mrb[0].mxu0 %v203
    %v286 = vpop.f32.mrb[0].mxu0
    %v287 = vadd.f32 0.0, %v286
    %v288 = vpop.f32.mrb[0].mxu0
    %289 = vdwg.mxu0
    %v290 = vld [vmem:[#allocation2 + $0x108] sm:$0x1]
    %v291 = vlaneseq
    %v292 = vshrl.u32 %v291, 7
    %v293 = vsub.s32 0, %v292
    %v294 = vrot.slane %v290, %v293
    %vm295 = vcmask 261120
    %v297 = vsel %vm295, %v169, 0
    %v300 = vsel %vm295, %v174, 0
    %v303 = vsel %vm295, %v179, 0
    %v306 = vsel %vm295, %v184, 0
    %308 = vmatprep.subr.mxu0 0.0
    %309 = vmatpush1.msra.mxu0 %v272
    %310 = vmatprep.subr.mxu0 0.0
    %311 = vmatpush1.msra.mxu0 %v277
    %312 = vmatprep.subr.mxu0 0.0
    %313 = vmatpush1.msra.mxu0 %v282
    %314 = vmatprep.subr.mxu0 0.0
    %315 = vmatpush1.msra.mxu0 %v287
    %316 = vmatprep.subr.mxu0 0.0
    %317 = vmatpush1.msra.mxu0 0.0
    %318 = vmatprep.subr.mxu0 0.0
    %319 = vmatpush1.msra.mxu0 0.0
    %320 = vmatprep.subr.mxu0 0.0
    %321 = vmatpush1.msra.mxu0 0.0
    %322 = vmatprep.subr.mxu0 0.0
    %323 = vmatpush1.msra.mxu0 0.0
    %324 = vmatprep.subr.mxu0 0.0
    %325 = vmatpush1.msra.mxu0 0.0
    %326 = vmatprep.subr.mxu0 0.0
    %327 = vmatpush1.msra.mxu0 0.0
    %328 = vmatprep.subr.mxu0 0.0
    %329 = vmatpush1.msra.mxu0 0.0
    %330 = vmatprep.subr.mxu0 0.0
    %331 = vmatpush1.msra.mxu0 0.0
    %332 = vmatprep.subr.mxu0 0.0
    %333 = vmatpush1.msra.mxu0 0.0
    %334 = vmatprep.subr.mxu0 0.0
    %335 = vmatpush1.msra.mxu0 0.0
    %336 = vmatprep.subr.mxu0 0.0
    %337 = vmatpush1.msra.mxu0 0.0
    %338 = vmatprep.subr.mxu0 0.0
    %339 = vmatpush1.msra.mxu0 0.0
    %340 = vmatprep.subr.mxu0 0.0
    %341 = vmatpush1.msra.mxu0 0.0
    %342 = vmatprep.subr.mxu0 0.0
    %343 = vmatpush1.msra.mxu0 0.0
    %344 = vmatprep.subr.mxu0 0.0
    %345 = vmatpush1.msra.mxu0 0.0
    %346 = vmatprep.subr.mxu0 0.0
    %347 = vmatpush1.msra.mxu0 0.0
    %348 = vmatprep.subr.mxu0 0.0
    %349 = vmatpush1.msra.mxu0 0.0
    %350 = vmatprep.subr.mxu0 0.0
    %351 = vmatpush1.msra.mxu0 0.0
    %352 = vmatprep.subr.mxu0 0.0
    %353 = vmatpush1.msra.mxu0 0.0
    %354 = vmatprep.subr.mxu0 0.0
    %355 = vmatpush1.msra.mxu0 0.0
    %356 = vmatprep.subr.mxu0 0.0
    %357 = vmatpush1.msra.mxu0 0.0
    %358 = vmatprep.subr.mxu0 0.0
    %359 = vmatpush1.msra.mxu0 0.0
    %360 = vmatprep.subr.mxu0 0.0
    %361 = vmatpush1.msra.mxu0 0.0
    %362 = vmatprep.subr.mxu0 0.0
    %363 = vmatpush1.msra.mxu0 0.0
    %364 = vmatprep.subr.mxu0 0.0
    %365 = vmatpush1.msra.mxu0 0.0
    %366 = vmatprep.subr.mxu0 0.0
    %367 = vmatpush1.msra.mxu0 0.0
    %368 = vmatprep.subr.mxu0 0.0
    %369 = vmatpush1.msra.mxu0 0.0
    %370 = vmatprep.subr.mxu0 0.0
    %371 = vmatpush1.msra.mxu0 0.0
    %372 = vmatprep.mubr.f32.mxu0 0.0
    %373 = vmatmul.mubr.f32.gmra.mrb[0].mxu0 %v297
    %v374 = vpop.f32.mrb[0].mxu0
    %v375 = vadd.f32 %v294, %v374
    %v376 = vpop.f32.mrb[0].mxu0
    %377 = vmatprep.mubr.f32.mxu0 0.0
    %378 = vmatmul.mubr.f32.gmra.mrb[0].mxu0 %v300
    %v379 = vpop.f32.mrb[0].mxu0
    %v380 = vadd.f32 %v294, %v379
    %v381 = vpop.f32.mrb[0].mxu0
    %382 = vmatprep.mubr.f32.mxu0 0.0
    %383 = vmatmul.mubr.f32.gmra.mrb[0].mxu0 %v303
    %v384 = vpop.f32.mrb[0].mxu0
    %v385 = vadd.f32 %v294, %v384
    %v386 = vpop.f32.mrb[0].mxu0
    %387 = vmatprep.mubr.f32.mxu0 0.0
    %388 = vmatmul.mubr.f32.gmra.mrb[0].mxu0 %v306
    %v389 = vpop.f32.mrb[0].mxu0
    %v390 = vadd.f32 %v294, %v389
    %v391 = vpop.f32.mrb[0].mxu0
    %392 = vdwg.mxu0
    %v393 = vmax.f32 %v375, 0.0
    %v394 = vmax.f32 %v380, 0.0
    %v395 = vmax.f32 %v385, 0.0
    %v396 = vmax.f32 %v390, 0.0
    %v397 = vld [vmem:[#allocation2 + $0x8] sm:$0xff]
    %v398 = vld [vmem:[#allocation2 + $0x10] sm:$0xff]
    %v399 = vld [vmem:[#allocation2 + $0x18] sm:$0xff]
    %v400 = vld [vmem:[#allocation2 + $0x20] sm:$0xff]
    %v401 = vld [vmem:[#allocation2 + $0x28] sm:$0xff]
    %v402 = vld [vmem:[#allocation2 + $0x30] sm:$0xff]
    %v403 = vld [vmem:[#allocation2 + $0x38] sm:$0xff]
    %v404 = vld [vmem:[#allocation2 + $0x40] sm:$0xff]
    %v405 = vld [vmem:[#allocation2 + $0x48] sm:$0xff]
    %v406 = vld [vmem:[#allocation2 + $0x50] sm:$0xff]
    %v407 = vld [vmem:[#allocation2 + $0x58] sm:$0xff]
    %v408 = vld [vmem:[#allocation2 + $0x60] sm:$0xff]
    %v409 = vld [vmem:[#allocation2 + $0x68] sm:$0xff]
    %v410 = vld [vmem:[#allocation2 + $0x70] sm:$0xff]
    %v411 = vld [vmem:[#allocation2 + $0x78] sm:$0xff]
    %v412 = vld [vmem:[#allocation2 + $0x80] sm:$0xff]
    %413 = vmatprep.subr.mxu0 0.0
    %414 = vmatpush1.msra.mxu0 %v397
    %415 = vmatprep.subr.mxu0 0.0
    %416 = vmatpush1.msra.mxu0 %v398
    %417 = vmatprep.subr.mxu0 0.0
    %418 = vmatpush1.msra.mxu0 %v399
    %419 = vmatprep.subr.mxu0 0.0
    %420 = vmatpush1.msra.mxu0 %v400
    %421 = vmatprep.subr.mxu0 0.0
    %422 = vmatpush1.msra.mxu0 %v401
    %423 = vmatprep.subr.mxu0 0.0
    %424 = vmatpush1.msra.mxu0 %v402
    %425 = vmatprep.subr.mxu0 0.0
    %426 = vmatpush1.msra.mxu0 %v403
    %427 = vmatprep.subr.mxu0 0.0
    %428 = vmatpush1.msra.mxu0 %v404
    %429 = vmatprep.subr.mxu0 0.0
    %430 = vmatpush1.msra.mxu0 %v405
    %431 = vmatprep.subr.mxu0 0.0
    %432 = vmatpush1.msra.mxu0 %v406
    %433 = vmatprep.subr.mxu0 0.0
    %434 = vmatpush1.msra.mxu0 %v407
    %435 = vmatprep.subr.mxu0 0.0
    %436 = vmatpush1.msra.mxu0 %v408
    %437 = vmatprep.subr.mxu0 0.0
    %438 = vmatpush1.msra.mxu0 %v409
    %439 = vmatprep.subr.mxu0 0.0
    %440 = vmatpush1.msra.mxu0 %v410
    %441 = vmatprep.subr.mxu0 0.0
    %442 = vmatpush1.msra.mxu0 %v411
    %443 = vmatprep.subr.mxu0 0.0
    %444 = vmatpush1.msra.mxu0 %v412
    %445 = vmatprep.subr.mxu0 0.0
    %446 = vmatpush1.msra.mxu0 0.0
    %447 = vmatprep.subr.mxu0 0.0
    %448 = vmatpush1.msra.mxu0 0.0
    %449 = vmatprep.subr.mxu0 0.0
    %450 = vmatpush1.msra.mxu0 0.0
    %451 = vmatprep.subr.mxu0 0.0
    %452 = vmatpush1.msra.mxu0 0.0
    %453 = vmatprep.subr.mxu0 0.0
    %454 = vmatpush1.msra.mxu0 0.0
    %455 = vmatprep.subr.mxu0 0.0
    %456 = vmatpush1.msra.mxu0 0.0
    %457 = vmatprep.subr.mxu0 0.0
    %458 = vmatpush1.msra.mxu0 0.0
    %459 = vmatprep.subr.mxu0 0.0
    %460 = vmatpush1.msra.mxu0 0.0
    %461 = vmatprep.subr.mxu0 0.0
    %462 = vmatpush1.msra.mxu0 0.0
    %463 = vmatprep.subr.mxu0 0.0
    %464 = vmatpush1.msra.mxu0 0.0
    %465 = vmatprep.subr.mxu0 0.0
    %466 = vmatpush1.msra.mxu0 0.0
    %467 = vmatprep.subr.mxu0 0.0
    %468 = vmatpush1.msra.mxu0 0.0
    %469 = vmatprep.subr.mxu0 0.0
    %470 = vmatpush1.msra.mxu0 0.0
    %471 = vmatprep.subr.mxu0 0.0
    %472 = vmatpush1.msra.mxu0 0.0
    %473 = vmatprep.subr.mxu0 0.0
    %474 = vmatpush1.msra.mxu0 0.0
    %475 = vmatprep.subr.mxu0 0.0
    %476 = vmatpush1.msra.mxu0 0.0
    %477 = vmatprep.mubr.f32.mxu0 0.0
    %478 = vmatmul.mubr.f32.gmra.mrb[0].mxu0 %v393
    %v479 = vpop.f32.mrb[0].mxu0
    %v480 = vadd.f32 0.0, %v479
    %v481 = vpop.f32.mrb[0].mxu0
    %482 = vmatprep.mubr.f32.mxu0 0.0
    %483 = vmatmul.mubr.f32.gmra.mrb[0].mxu0 %v394
    %v484 = vpop.f32.mrb[0].mxu0
    %v485 = vadd.f32 0.0, %v484
    %v486 = vpop.f32.mrb[0].mxu0
    %487 = vmatprep.mubr.f32.mxu0 0.0
    %488 = vmatmul.mubr.f32.gmra.mrb[0].mxu0 %v395
    %v489 = vpop.f32.mrb[0].mxu0
    %v490 = vadd.f32 0.0, %v489
    %v491 = vpop.f32.mrb[0].mxu0
    %492 = vmatprep.mubr.f32.mxu0 0.0
    %493 = vmatmul.mubr.f32.gmra.mrb[0].mxu0 %v396
    %v494 = vpop.f32.mrb[0].mxu0
    %v495 = vadd.f32 0.0, %v494
    %v496 = vpop.f32.mrb[0].mxu0
    %497 = vdwg.mxu0
    %v498 = vld [vmem:[#allocation2 + $0x109] sm:$0x1]
    %v499 = vlaneseq
    %v500 = vshrl.u32 %v499, 7
    %v501 = vsub.s32 0, %v500
    %v502 = vrot.slane %v498, %v501
    %503 = vmatprep.subr.mxu0 0.0
    %504 = vmatpush1.msra.mxu0 %v480
    %505 = vmatprep.subr.mxu0 0.0
    %506 = vmatpush1.msra.mxu0 %v485
    %507 = vmatprep.subr.mxu0 0.0
    %508 = vmatpush1.msra.mxu0 %v490
    %509 = vmatprep.subr.mxu0 0.0
    %510 = vmatpush1.msra.mxu0 %v495
    %511 = vmatprep.subr.mxu0 0.0
    %512 = vmatpush1.msra.mxu0 0.0
    %513 = vmatprep.subr.mxu0 0.0
    %514 = vmatpush1.msra.mxu0 0.0
    %515 = vmatprep.subr.mxu0 0.0
    %516 = vmatpush1.msra.mxu0 0.0
    %517 = vmatprep.subr.mxu0 0.0
    %518 = vmatpush1.msra.mxu0 0.0
    %519 = vmatprep.subr.mxu0 0.0
    %520 = vmatpush1.msra.mxu0 0.0
    %521 = vmatprep.subr.mxu0 0.0
    %522 = vmatpush1.msra.mxu0 0.0
    %523 = vmatprep.subr.mxu0 0.0
    %524 = vmatpush1.msra.mxu0 0.0
    %525 = vmatprep.subr.mxu0 0.0
    %526 = vmatpush1.msra.mxu0 0.0
    %527 = vmatprep.subr.mxu0 0.0
    %528 = vmatpush1.msra.mxu0 0.0
    %529 = vmatprep.subr.mxu0 0.0
    %530 = vmatpush1.msra.mxu0 0.0
    %531 = vmatprep.subr.mxu0 0.0
    %532 = vmatpush1.msra.mxu0 0.0
    %533 = vmatprep.subr.mxu0 0.0
    %534 = vmatpush1.msra.mxu0 0.0
    %535 = vmatprep.subr.mxu0 0.0
    %536 = vmatpush1.msra.mxu0 0.0
    %537 = vmatprep.subr.mxu0 0.0
    %538 = vmatpush1.msra.mxu0 0.0
    %539 = vmatprep.subr.mxu0 0.0
    %540 = vmatpush1.msra.mxu0 0.0
    %541 = vmatprep.subr.mxu0 0.0
    %542 = vmatpush1.msra.mxu0 0.0
    %543 = vmatprep.subr.mxu0 0.0
    %544 = vmatpush1.msra.mxu0 0.0
    %545 = vmatprep.subr.mxu0 0.0
    %546 = vmatpush1.msra.mxu0 0.0
    %547 = vmatprep.subr.mxu0 0.0
    %548 = vmatpush1.msra.mxu0 0.0
    %549 = vmatprep.subr.mxu0 0.0
    %550 = vmatpush1.msra.mxu0 0.0
    %551 = vmatprep.subr.mxu0 0.0
    %552 = vmatpush1.msra.mxu0 0.0
    %553 = vmatprep.subr.mxu0 0.0
    %554 = vmatpush1.msra.mxu0 0.0
    %555 = vmatprep.subr.mxu0 0.0
    %556 = vmatpush1.msra.mxu0 0.0
    %557 = vmatprep.subr.mxu0 0.0
    %558 = vmatpush1.msra.mxu0 0.0
    %559 = vmatprep.subr.mxu0 0.0
    %560 = vmatpush1.msra.mxu0 0.0
    %561 = vmatprep.subr.mxu0 0.0
    %562 = vmatpush1.msra.mxu0 0.0
    %563 = vmatprep.subr.mxu0 0.0
    %564 = vmatpush1.msra.mxu0 0.0
    %565 = vmatprep.subr.mxu0 0.0
    %566 = vmatpush1.msra.mxu0 0.0
    %567 = vmatprep.mubr.f32.mxu0 0.0
    %568 = vmatmul.mubr.f32.gmra.mrb[0].mxu0 %v297
    %v569 = vpop.f32.mrb[0].mxu0
    %v570 = vadd.f32 %v502, %v569
    %v571 = vpop.f32.mrb[0].mxu0
    %572 = vmatprep.mubr.f32.mxu0 0.0
    %573 = vmatmul.mubr.f32.gmra.mrb[0].mxu0 %v300
    %v574 = vpop.f32.mrb[0].mxu0
    %v575 = vadd.f32 %v502, %v574
    %v576 = vpop.f32.mrb[0].mxu0
    %577 = vmatprep.mubr.f32.mxu0 0.0
    %578 = vmatmul.mubr.f32.gmra.mrb[0].mxu0 %v303
    %v579 = vpop.f32.mrb[0].mxu0
    %v580 = vadd.f32 %v502, %v579
    %v581 = vpop.f32.mrb[0].mxu0
    %582 = vmatprep.mubr.f32.mxu0 0.0
    %583 = vmatmul.mubr.f32.gmra.mrb[0].mxu0 %v306
    %v584 = vpop.f32.mrb[0].mxu0
    %v585 = vadd.f32 %v502, %v584
    %v586 = vpop.f32.mrb[0].mxu0
    %587 = vdwg.mxu0
    %v588 = vmax.f32 %v570, 0.0
    %v589 = vmax.f32 %v575, 0.0
    %v590 = vmax.f32 %v580, 0.0
    %v591 = vmax.f32 %v585, 0.0
    %v592 = vld [vmem:[#allocation2 + $0x88] sm:$0xff]
    %v593 = vld [vmem:[#allocation2 + $0x90] sm:$0xff]
    %v594 = vld [vmem:[#allocation2 + $0x98] sm:$0xff]
    %v595 = vld [vmem:[#allocation2 + $0xa0] sm:$0xff]
    %v596 = vld [vmem:[#allocation2 + $0xa8] sm:$0xff]
    %v597 = vld [vmem:[#allocation2 + $0xb0] sm:$0xff]
    %v598 = vld [vmem:[#allocation2 + $0xb8] sm:$0xff]
    %v599 = vld [vmem:[#allocation2 + $0xc0] sm:$0xff]
    %v600 = vld [vmem:[#allocation2 + $0xc8] sm:$0xff]
    %v601 = vld [vmem:[#allocation2 + $0xd0] sm:$0xff]
    %v602 = vld [vmem:[#allocation2 + $0xd8] sm:$0xff]
    %v603 = vld [vmem:[#allocation2 + $0xe0] sm:$0xff]
    %v604 = vld [vmem:[#allocation2 + $0xe8] sm:$0xff]
    %v605 = vld [vmem:[#allocation2 + $0xf0] sm:$0xff]
    %v606 = vld [vmem:[#allocation2 + $0xf8] sm:$0xff]
    %v607 = vld [vmem:[#allocation2 + $0x100] sm:$0xff]
    %v608 = vld [vmem:[#allocation2 + $0x10a] sm:$0x1]
    %v609 = vlaneseq
    %v610 = vshrl.u32 %v609, 7
    %v611 = vsub.s32 0, %v610
    %v612 = vrot.slane %v608, %v611
    %613 = vmatprep.subr.mxu0 0.0
    %614 = vmatpush1.msra.mxu0 %v592
    %615 = vmatprep.subr.mxu0 0.0
    %616 = vmatpush1.msra.mxu0 %v593
    %617 = vmatprep.subr.mxu0 0.0
    %618 = vmatpush1.msra.mxu0 %v594
    %619 = vmatprep.subr.mxu0 0.0
    %620 = vmatpush1.msra.mxu0 %v595
    %621 = vmatprep.subr.mxu0 0.0
    %622 = vmatpush1.msra.mxu0 %v596
    %623 = vmatprep.subr.mxu0 0.0
    %624 = vmatpush1.msra.mxu0 %v597
    %625 = vmatprep.subr.mxu0 0.0
    %626 = vmatpush1.msra.mxu0 %v598
    %627 = vmatprep.subr.mxu0 0.0
    %628 = vmatpush1.msra.mxu0 %v599
    %629 = vmatprep.subr.mxu0 0.0
    %630 = vmatpush1.msra.mxu0 %v600
    %631 = vmatprep.subr.mxu0 0.0
    %632 = vmatpush1.msra.mxu0 %v601
    %633 = vmatprep.subr.mxu0 0.0
    %634 = vmatpush1.msra.mxu0 %v602
    %635 = vmatprep.subr.mxu0 0.0
    %636 = vmatpush1.msra.mxu0 %v603
    %637 = vmatprep.subr.mxu0 0.0
    %638 = vmatpush1.msra.mxu0 %v604
    %639 = vmatprep.subr.mxu0 0.0
    %640 = vmatpush1.msra.mxu0 %v605
    %641 = vmatprep.subr.mxu0 0.0
    %642 = vmatpush1.msra.mxu0 %v606
    %643 = vmatprep.subr.mxu0 0.0
    %644 = vmatpush1.msra.mxu0 %v607
    %645 = vmatprep.subr.mxu0 0.0
    %646 = vmatpush1.msra.mxu0 0.0
    %647 = vmatprep.subr.mxu0 0.0
    %648 = vmatpush1.msra.mxu0 0.0
    %649 = vmatprep.subr.mxu0 0.0
    %650 = vmatpush1.msra.mxu0 0.0
    %651 = vmatprep.subr.mxu0 0.0
    %652 = vmatpush1.msra.mxu0 0.0
    %653 = vmatprep.subr.mxu0 0.0
    %654 = vmatpush1.msra.mxu0 0.0
    %655 = vmatprep.subr.mxu0 0.0
    %656 = vmatpush1.msra.mxu0 0.0
    %657 = vmatprep.subr.mxu0 0.0
    %658 = vmatpush1.msra.mxu0 0.0
    %659 = vmatprep.subr.mxu0 0.0
    %660 = vmatpush1.msra.mxu0 0.0
    %661 = vmatprep.subr.mxu0 0.0
    %662 = vmatpush1.msra.mxu0 0.0
    %663 = vmatprep.subr.mxu0 0.0
    %664 = vmatpush1.msra.mxu0 0.0
    %665 = vmatprep.subr.mxu0 0.0
    %666 = vmatpush1.msra.mxu0 0.0
    %667 = vmatprep.subr.mxu0 0.0
    %668 = vmatpush1.msra.mxu0 0.0
    %669 = vmatprep.subr.mxu0 0.0
    %670 = vmatpush1.msra.mxu0 0.0
    %671 = vmatprep.subr.mxu0 0.0
    %672 = vmatpush1.msra.mxu0 0.0
    %673 = vmatprep.subr.mxu0 0.0
    %674 = vmatpush1.msra.mxu0 0.0
    %675 = vmatprep.subr.mxu0 0.0
    %676 = vmatpush1.msra.mxu0 0.0
    %677 = vmatprep.mubr.f32.mxu0 0.0
    %678 = vmatmul.mubr.f32.gmra.mrb[0].mxu0 %v588
    %v679 = vpop.f32.mrb[0].mxu0
    %v680 = vadd.f32 %v612, %v679
    %v681 = vpop.f32.mrb[0].mxu0
    %682 = vmatprep.mubr.f32.mxu0 0.0
    %683 = vmatmul.mubr.f32.gmra.mrb[0].mxu0 %v589
    %v684 = vpop.f32.mrb[0].mxu0
    %v685 = vadd.f32 %v612, %v684
    %v686 = vpop.f32.mrb[0].mxu0
    %687 = vmatprep.mubr.f32.mxu0 0.0
    %688 = vmatmul.mubr.f32.gmra.mrb[0].mxu0 %v590
    %v689 = vpop.f32.mrb[0].mxu0
    %v690 = vadd.f32 %v612, %v689
    %v691 = vpop.f32.mrb[0].mxu0
    %692 = vmatprep.mubr.f32.mxu0 0.0
    %693 = vmatmul.mubr.f32.gmra.mrb[0].mxu0 %v591
    %v694 = vpop.f32.mrb[0].mxu0
    %v695 = vadd.f32 %v612, %v694
    %v696 = vpop.f32.mrb[0].mxu0
    %697 = vdwg.mxu0
    %698 = vmax.xlane.f32.xlu0 %v680
    %v699 = vpop.xlane.xlu0 %698
    %700 = vmax.xlane.f32.xlu0 %v685
    %v701 = vpop.xlane.xlu0 %700
    %702 = vmax.xlane.f32.xlu0 %v690
    %v703 = vpop.xlane.xlu0 %702
    %704 = vmax.xlane.f32.xlu0 %v695
    %v705 = vpop.xlane.xlu0 %704
    %v706 = vsub.f32 %v680, %v699
    %v707 = vsub.f32 %v685, %v701
    %v708 = vsub.f32 %v690, %v703
    %v709 = vsub.f32 %v695, %v705
    %v710 = vmul.f32 %v706, 1.442695
    %v711 = vpow.pop %v710
    %v712 = vmul.f32 %v707, 1.442695
    %v713 = vpow.pop %v712
    %v714 = vmul.f32 %v708, 1.442695
    %v715 = vpow.pop %v714
    %v716 = vmul.f32 %v709, 1.442695
    %v717 = vpow.pop %v716
    %718 = vadd.xlane.f32.xlu0 %v711
    %v719 = vpop.xlane.xlu0 %718
    %720 = vadd.xlane.f32.xlu0 %v713
    %v721 = vpop.xlane.xlu0 %720
    %722 = vadd.xlane.f32.xlu0 %v715
    %v723 = vpop.xlane.xlu0 %722
    %724 = vadd.xlane.f32.xlu0 %v717
    %v725 = vpop.xlane.xlu0 %724
    %v726 = vrcp.pop %v719
    %v727 = vmul.f32 %v711, %v726
    %v728 = vrcp.pop %v721
    %v729 = vmul.f32 %v713, %v728
    %v730 = vrcp.pop %v723
    %v731 = vmul.f32 %v715, %v730
    %v732 = vrcp.pop %v725
    %v733 = vmul.f32 %v717, %v732
    %734 = vst [vmem:[%s3] sm:$0xff] %v727
    %735 = vst [vmem:[%s3 + $0x8] sm:$0xff] %v729
    %736 = vst [vmem:[%s3 + $0x10] sm:$0xff] %v731
    %737 = vst [vmem:[%s3 + $0x18] sm:$0xff] %v733
    // Predicated region
    $region18: #{net_forward.1} parent=1 // pred_check
      _
    $region19: #{net_forward.1} parent=1 // pred_check_branch
      %739 = sbr.rel (0) target = $region21
    $region20: #{net_forward.1} parent=1 // pred_region
      _
    $region21: #{net_forward.1} parent=1 // pred_fallthru
      _
    // Predicated region
    $region22: #{net_forward.1} parent=1 // pred_check
      _
    $region23: #{net_forward.1} parent=1 // pred_check_branch
      %741 = sbr.rel (0) target = $region25
    $region24: #{net_forward.1} parent=1 // pred_region
      _
    $region25: #{net_forward.1} parent=1 // pred_fallthru
      _
    %742 = vsyncpa [#allocation3], 1

</llo_original>
